<compile_context>
chip_gen: v7x
topology: tpu7x:2x2x1
jax: 0.10.0
libtpu: 0.0.40
codegen_flags: <defaults>
</compile_context>

<pallas_src>
import functools

import numpy as np
import jax
import jax.numpy as jnp
from jax.experimental import pallas as pl
from jax.experimental.pallas import tpu as pltpu

DEFAULT_TIME_WARP_MODE = "bicubic"

_A = -0.75  # PyTorch bicubic convolution coefficient


def _round_up(x: int, m: int) -> int:
    return ((x + m - 1) // m) * m


def _cubic_weights(frac: np.ndarray) -> np.ndarray:
    """PyTorch get_cubic_upsample_coefficients (a=-0.75), vectorized: (N,) -> (N, 4)."""
    a = _A

    def c1(x):  # |x| <= 1
        return ((a + 2.0) * x - (a + 3.0)) * x * x + 1.0

    def c2(x):  # 1 < |x| < 2
        return ((a * x - 5.0 * a) * x + 8.0 * a) * x - 4.0 * a

    return np.stack([c2(frac + 1.0), c1(frac), c1(1.0 - frac), c2(2.0 - frac)], axis=-1)


def _tap_tables(in_size: int, out_size: int, offset: int):
    """4-tap description of a 1-D bicubic resize (align_corners=False, border
    clamped) mapping input rows [offset, offset+in_size) onto out_size rows.

    Returns:
      taps: (out_size, 4) int64 — global source-row index of each tap (clamped).
      wts:  (out_size, 4) float64 — tap weights.
    """
    assert out_size >= 1 and in_size >= 1
    o = np.arange(out_size, dtype=np.float64)
    real = (in_size / out_size) * (o + 0.5) - 0.5
    idx = np.floor(real).astype(np.int64)
    frac = real - idx
    w = _cubic_weights(frac)                                    # (out, 4)
    taps = idx[:, None] + np.arange(-1, 3)[None, :]             # (out, 4)
    taps = np.clip(taps, 0, in_size - 1) + offset               # border clamp, globalize
    return taps, w


# ----------------------------- Pallas kernel ------------------------------ #
def _time_warp_kernel(s_ref, band_ref, x_ref, o_ref):
    # s_ref   : SMEM int32 (B * n_tiles,) — per-(b, j) source-slab start row (mult of 8)
    # band_ref: VMEM (tm, S)              — dense banded resample weights for this tile
    # x_ref   : VMEM (t_pad, F)           — whole padded sample b (DMA'd once per b)
    # o_ref   : VMEM (tm, F)              — output row tile j of sample b
    b = pl.program_id(0)
    j = pl.program_id(1)
    s_len = band_ref.shape[1]                       # S (static)
    start = s_ref[b * pl.num_programs(1) + j]       # slab start row for this tile
    start = pl.multiple_of(start, 8)                # host guarantees sublane alignment
    slab = x_ref[pl.ds(start, s_len), :]            # (S, F) aligned source slab
    acc = jnp.dot(band_ref[...], slab.astype(band_ref.dtype),
                  preferred_element_type=jnp.float32)           # MXU: (tm,S)x(S,F)
    o_ref[...] = acc.astype(o_ref.dtype)


@functools.partial(jax.jit, static_argnums=(3,))
def _apply_time_warp(x_pad, s_tab, band, tm):
    """y[b, j*tm + r, :] = sum_c band[b, j, r, c] * x_pad[b, s[b,j] + c, :]."""
    B, t_pad, F = x_pad.shape
    n_tiles = t_pad // tm
    S = band.shape[-1]

    # VMEM budget: whole sample + band tile + output tile, all double-buffered.
    vmem_bytes = 2 * (t_pad * F * x_pad.dtype.itemsize
                      + tm * S * band.dtype.itemsize
                      + tm * F * x_pad.dtype.itemsize) + (1 << 20)
    vmem_bytes = int(min(max(vmem_bytes, 16 << 20), 56 << 20))

    return pl.pallas_call(
        _time_warp_kernel,
        out_shape=jax.ShapeDtypeStruct((B, t_pad, F), x_pad.dtype),
        grid=(B, n_tiles),
        in_specs=[
            pl.BlockSpec(memory_space=pltpu.MemorySpace.SMEM),              # slab starts
            pl.BlockSpec((None, None, tm, S), lambda b, j: (b, j, 0, 0)),   # band tile
            pl.BlockSpec((None, t_pad, F), lambda b, j: (b, 0, 0)),         # whole sample
        ],
        out_specs=pl.BlockSpec((None, tm, F), lambda b, j: (b, j, 0)),
        compiler_params=pltpu.CompilerParams(
            dimension_semantics=("parallel", "parallel"),
            vmem_limit_bytes=vmem_bytes),
    )(s_tab, band, x_pad)


# ------------------------------ Module port ------------------------------- #
class TimeWarpFused:
    """JAX/Pallas port of espnet2 TimeWarpFused (mode='bicubic')."""

    def __init__(self, window: int = 80, mode: str = DEFAULT_TIME_WARP_MODE,
                 seed: int = 0, debug_check: bool = False):
        assert mode == "bicubic", "only bicubic is implemented"
        self.window = window
        self.mode = mode
        self._rng = np.random.RandomState(seed)
        self._debug_check = debug_check  # off by default: avoids device->host syncs

    def __call__(self, x, x_lengths):
        out = []
        lengths = np.asarray(x_lengths)  # one small D2H copy; lengths drive shapes
        for feat in x:  # feat: (Batch, Time, Freq)
            B, T_feat, F = feat.shape
            t_list = [int(lengths[i]) for i in range(B)]
            t_max = max(t_list)

            # --- per-sample warp draws and compact 4-tap tables (host, O(T)) ---
            taps_all, w_all = [], []
            for i in range(B):
                t = t_list[i]
                if t - self.window <= self.window:
                    # Mirrors the PyTorch module's early `return tens.view(*org_size)`
                    # (drops the (list, lengths) contract — that is the spec).
                    return feat[i, :t][None]
                center = int(self._rng.randint(self.window, t - self.window))
                warped = int(self._rng.randint(center - self.window,
                                               center + self.window)) + 1
                assert 0 < warped < t
                lt, lw = _tap_tables(center, warped, 0)            # rows [0, warped)
                rt, rw = _tap_tables(t - center, t - warped, center)  # rows [warped, t)
                taps_all.append(np.concatenate([lt, rt], axis=0))  # (t, 4)
                w_all.append(np.concatenate([lw, rw], axis=0))     # (t, 4)

            # --- tile geometry (bucketed so variable lengths don't recompile) ---
            if t_max <= 256:
                t_pad = max(8, _round_up(t_max, 64))
                tm = t_pad
            elif F <= 256:
                tm = 512                      # amortize per-step overhead (narrow Freq)
                t_pad = _round_up(t_max, tm)
            else:
                tm = 256                      # keep VMEM in check for wide Freq / v7x
                t_pad = _round_up(t_max, tm)
            n_tiles = t_pad // tm

            # --- per-tile source span -> slab size S and aligned slab starts ---
            lo = np.full((B, n_tiles), t_pad, dtype=np.int64)
            hi = np.zeros((B, n_tiles), dtype=np.int64)
            for i in range(B):
                t = t_list[i]
                tiles = np.arange(t) // tm
                np.minimum.at(lo[i], tiles, taps_all[i].min(axis=1))
                np.maximum.at(hi[i], tiles, taps_all[i].max(axis=1) + 1)
            valid = hi > 0
            lo8 = (lo // 8) * 8
            span = np.where(valid, hi - lo8, 0)
            S = int(min(t_pad, _round_up(max(8, int(span.max())), 64)))
            s_tab = np.where(valid, np.minimum(lo8, t_pad - S), 0).astype(np.int32)

            # --- dense banded weight matrices: one (tm, S) block per (b, tile) ---
            band = np.zeros((B, n_tiles, tm, S), dtype=np.float32)
            for i in range(B):
                t = t_list[i]
                rows = np.arange(t)
                tiles = rows // tm
                r_loc = rows % tm
                cols = taps_all[i] - s_tab[i, tiles][:, None]      # (t, 4), in [0, S)
                np.add.at(band[i], (tiles[:, None], r_loc[:, None], cols), w_all[i])
                # rows [t, t_pad): band stays 0 -> zero output == pad_list(0.0)

            # --- pad Time only (Freq block == full array dim, no Freq pad) ---
            if T_feat == t_pad:
                x_in = feat
            elif T_feat > t_pad:
                x_in = feat[:, :t_pad, :]
            else:
                x_in = jnp.pad(feat, ((0, 0), (0, t_pad - T_feat), (0, 0)))

            if feat.dtype == jnp.bfloat16:
                band_dev = jnp.asarray(band, dtype=jnp.bfloat16)   # native MXU bf16 path
            else:
                band_dev = jnp.asarray(band)
            s_dev = jnp.asarray(s_tab.reshape(-1))

            y_pad = _apply_time_warp(x_in, s_dev, band_dev, tm)

            if self._debug_check:  # debug only: forces a host sync
                yh = np.asarray(y_pad, dtype=np.float64)
                xh = np.asarray(x_in, dtype=np.float64)
                for i in range(B):
                    t = t_list[i]
                    ref = (w_all[i][:, :, None] * xh[i][taps_all[i]]).sum(axis=1)
                    np.testing.assert_allclose(yh[i, :t], ref, rtol=5e-2, atol=5e-2)
                    if t < t_max:
                        np.testing.assert_allclose(yh[i, t:t_max], 0.0, atol=1e-6)

            out.append(y_pad if t_pad == t_max else y_pad[:, :t_max, :])
        return out, x_lengths


# --------------------------------- main ------------------------------------ #
if __name__ == "__main__":
    key = jax.random.PRNGKey(0)
    B, T, F = 2, 24, 16  # small shapes; T > 2*window so warping actually runs
    feat = jax.random.normal(key, (B, T, F), dtype=jnp.float32)
    x_lengths = jnp.array([24, 20], dtype=jnp.int32)

    module = TimeWarpFused(window=4, mode="bicubic", seed=0, debug_check=True)
    out, lens = module([feat], x_lengths)

    out = [jax.block_until_ready(o) for o in out]
    assert out[0].shape == (B, int(np.max(np.asarray(x_lengths))), F)
    assert bool(jnp.all(jnp.isfinite(out[0])))
    print("KERNEL_OK")
</pallas_src>

<mosaic_0001>
module attributes {stable_mosaic.version = 11 : i64} {
  func.func @_time_warp_kernel(%arg0: i32, %arg1: i32, %arg2: memref<2xi32, #tpu.memory_space<smem>>, %arg3: memref<1x1x64x64xf32, #tpu.memory_space<vmem>>, %arg4: memref<1x64x16xf32, #tpu.memory_space<vmem>>, %arg5: memref<1x64x16xf32, #tpu.memory_space<vmem>>) attributes {dimension_semantics = [#tpu.dimension_semantics<parallel>, #tpu.dimension_semantics<parallel>], iteration_bounds = array<i64: 2, 1>, scalar_prefetch = 0 : i64, scratch_operands = 0 : i64, tpu.core_type = #tpu.core_type<tc>, window_params = [{transform_indices = @transform_0, window_bounds = array<i64: 2>}, {transform_indices = @transform_1, window_bounds = array<i64: 1, 1, 64, 64>}, {transform_indices = @transform_2, window_bounds = array<i64: 1, 64, 16>}, {transform_indices = @transform_3, window_bounds = array<i64: 1, 64, 16>}]} {
    %c1_i32 = arith.constant 1 : i32
    %0 = arith.muli %arg0, %c1_i32 : i32
    %1 = arith.addi %0, %arg1 : i32
    %2 = arith.index_cast %1 : i32 to index
    %3 = memref.load %arg2[%2] : memref<2xi32, #tpu.memory_space<smem>>
    %4 = tpu.assume_multiple %3, 8 : i32
    %c0 = arith.constant 0 : index
    %5 = arith.index_cast %4 : i32 to index
    %c0_0 = arith.constant 0 : index
    %6 = vector.load %arg4[%c0, %5, %c0_0] : memref<1x64x16xf32, #tpu.memory_space<vmem>>, vector<1x64x16xf32>
    %7 = vector.shape_cast %6 : vector<1x64x16xf32> to vector<64x16xf32>
    %c0_1 = arith.constant 0 : index
    %c0_2 = arith.constant 0 : index
    %c0_3 = arith.constant 0 : index
    %c0_4 = arith.constant 0 : index
    %8 = vector.load %arg3[%c0_1, %c0_2, %c0_3, %c0_4] : memref<1x1x64x64xf32, #tpu.memory_space<vmem>>, vector<1x1x64x64xf32>
    %9 = vector.shape_cast %8 : vector<1x1x64x64xf32> to vector<64x64xf32>
    %cst = arith.constant dense<0.000000e+00> : vector<64x16xf32>
    %10 = tpu.matmul %9, %7, %cst {dimension_numbers = #tpu.dot_dimension_numbers<[1], [0], [0], [1], [0, 0, 1, 1], [], []>} : vector<64x64xf32>, vector<64x16xf32>, vector<64x16xf32> -> vector<64x16xf32>
    %c0_5 = arith.constant 0 : index
    %c0_6 = arith.constant 0 : index
    %c0_7 = arith.constant 0 : index
    %11 = vector.load %arg5[%c0_5, %c0_6, %c0_7] : memref<1x64x16xf32, #tpu.memory_space<vmem>>, vector<1x64x16xf32>
    %12 = vector.shape_cast %11 : vector<1x64x16xf32> to vector<64x16xf32>
    %13 = vector.shape_cast %10 : vector<64x16xf32> to vector<1x64x16xf32>
    tpu.vector_store %arg5[%c0_5, %c0_6, %c0_7], %13 {strides = array<i32>} : memref<1x64x16xf32, #tpu.memory_space<vmem>>, vector<1x64x16xf32>,
    return
  }
  func.func @transform_0(%arg0: i32, %arg1: i32) -> i32 {
    %c0_i32 = arith.constant 0 : i32
    %c0_i32_0 = arith.constant 0 : i32
    return %c0_i32 : i32
  }
  func.func @transform_1(%arg0: i32, %arg1: i32) -> (i32, i32, i32, i32) {
    %c0_i32 = arith.constant 0 : i32
    %c0_i32_0 = arith.constant 0 : i32
    %c0_i32_1 = arith.constant 0 : i32
    return %arg0, %arg1, %c0_i32, %c0_i32_0 : i32, i32, i32, i32
  }
  func.func @transform_2(%arg0: i32, %arg1: i32) -> (i32, i32, i32) {
    %c0_i32 = arith.constant 0 : i32
    %c0_i32_0 = arith.constant 0 : i32
    %c0_i32_1 = arith.constant 0 : i32
    return %arg0, %c0_i32, %c0_i32_0 : i32, i32, i32
  }
  func.func @transform_3(%arg0: i32, %arg1: i32) -> (i32, i32, i32) {
    %c0_i32 = arith.constant 0 : i32
    %c0_i32_0 = arith.constant 0 : i32
    return %arg0, %arg1, %c0_i32 : i32, i32, i32
  }
}

</mosaic_0001>

<llo_original>
// kernel: _apply_time_warp.1
$region0: #{_apply_time_warp.1}
  #allocation0 [shape = 'u32[]', space=smem, size = 0x4, offset = 0x4, fixed_abs, tag = 'smem constant byte address 0x4 - core index']
  #allocation1 [shape = 'u32[144,128]{1,0:T(1,128)}', space=vmem, size = 0x12000, scoped, tag = 'internal scratch']
  %s0 = inlined_call_operand.vmem [shape: s32[2], index: 0, kind: input, shape index: {}]
  %s1 = inlined_call_operand.vmem [shape: f32[2,1,64,64], index: 1, kind: input, shape index: {}]
  %s2 = inlined_call_operand.vmem [shape: f32[2,64,16], index: 2, kind: input, shape index: {}]
  %s3 = inlined_call_operand.vmem [shape: f32[2,64,16], index: 3, kind: output, shape index: {}]
  %s4 = sld [smem:[#allocation0]]
  $region49: #{_apply_time_warp.1} parent=0
    _
  %s6 = ssub.s32 1, %s4
  %s7 = scalar_select 0, %s6, %s4
  $region1: #{_apply_time_warp.1} parent=0
    #allocation2 [shape = 'u8[512]{0}', space=smem, size = 0x200, scoped, tag = 'input window, operand 0, single buffered']
    #allocation3 [shape = 's32[2]{0}', space=sflag, size = 0x8, scoped, tag = 'scoped memory for _apply_time_warp.1']
    %8 = vsyncpa [#allocation3], 0
    loop: start=0, step=1, limit=4
    $region2: #{_apply_time_warp.1} parent=1 // loop_pre_header
      _
    $region3: #{_apply_time_warp.1} parent=1 // loop_header
      %s10 = sphi 0, %s14
      %p11 = scmp.ge.s32.totalorder %s10, 4
      %s17 = sphi 0, %s29
      %s18 = sphi 0, %s25
      %s19 = sphi 0, %s17
      %s20 = sphi 0, %s18
      %s21 = sphi 0, %s19
      %s22 = sphi 0, %s20
      %s30 = sphi 0, %s30
      %s32 = sphi 0, %s30
      %s33 = sphi 0, %s32
      %s47 = sphi 0, %s33
      %s55 = sphi 0, %s57
      %s58 = sphi 0, %s55
      %s59 = sphi 0, %s58
      %s75 = sphi 0, %s59
      %s81 = sphi 0, %s83
      %s84 = sphi 0, %s81
      %s85 = sphi 0, %s84
      %s101 = sphi 0, %s85
      %s109 = sphi 0, %s111
      %s112 = sphi 0, %s109
      %s113 = sphi 0, %s112
      %s129 = sphi 0, %s113
    $region4: #{_apply_time_warp.1} parent=1 // loop_header_branch
      %13 = sbr.rel (%p11) target = $region8
    $region5: #{_apply_time_warp.1} parent=1 // loop_body
      %s15 = ssub.s32 %s10, 1
      %s16 = ssub.s32 %s10, 2
      %s23 = sadd.s32 1, %s18
      %p24 = scmp.ge.s32.totalorder %s23, 1
      %s25 = scalar_select %p24, 0, %s23
      %s26 = sadd.s32 1, %s17
      %s27 = scalar_select %p24, %s26, %s17
      %p28 = scmp.ge.s32.totalorder %s27, 2
      %s29 = scalar_select %p28, 0, %s27
      %s31 = sadd.s32 %s30, 1
      %p34 = scmp.eq.s32.totalorder %s10, 1
      %p35 = scmp.ne.s32.totalorder %s30, %s32
      %p36 = scmp.eq.s32.totalorder %s10, 0
      %p37 = por %p35, %p36
      %p38 = scmp.ne.s32.totalorder %s30, %s32
      %p39 = scmp.eq.s32.totalorder %s15, 1
      %p40 = por %p38, %p39
      %p41 = scmp.ne.s32.totalorder %s32, %s33
      %p42 = scmp.eq.s32.totalorder %s15, 0
      %p43 = por %p41, %p42
      %p44 = scmp.ne.s32.totalorder %s32, %s33
      %p45 = scmp.eq.s32.totalorder %s16, 1
      %p46 = por %p44, %p45
      %p48 = scmp.ne.s32.totalorder %s33, %s47
      %p49 = scmp.eq.s32.totalorder %s16, 0
      %p50 = por %p48, %p49
      %s51 = ssub.s32 %s17, %s29
      %s52 = ssub.s32 %s18, %s25
      %s53 = sor.u32 %s51, %s52
      %p54 = scmp.eq.s32.totalorder %s53, 0
      %s56 = sadd.s32 %s55, 1
      %s57 = scalar_select %p54, %s55, %s56
      %p60 = pneg %p54
      %p61 = scmp.eq.s32.totalorder %s10, 1
      %p62 = por %p60, %p61
      %p63 = scmp.ne.s32.totalorder %s55, %s58
      %p64 = scmp.eq.s32.totalorder %s10, 0
      %p65 = por %p63, %p64
      %p66 = scmp.ne.s32.totalorder %s55, %s58
      %p67 = scmp.eq.s32.totalorder %s15, 1
      %p68 = por %p66, %p67
      %p69 = scmp.ne.s32.totalorder %s58, %s59
      %p70 = scmp.eq.s32.totalorder %s15, 0
      %p71 = por %p69, %p70
      %p72 = scmp.ne.s32.totalorder %s58, %s59
      %p73 = scmp.eq.s32.totalorder %s16, 1
      %p74 = por %p72, %p73
      %p76 = scmp.ne.s32.totalorder %s59, %s75
      %p77 = scmp.eq.s32.totalorder %s16, 0
      %p78 = por %p76, %p77
      %s79 = ssub.s32 %s17, %s29
      %p80 = scmp.eq.s32.totalorder %s79, 0
      %s82 = sadd.s32 %s81, 1
      %s83 = scalar_select %p80, %s81, %s82
      %p86 = pneg %p80
      %p87 = scmp.eq.s32.totalorder %s10, 1
      %p88 = por %p86, %p87
      %p89 = scmp.ne.s32.totalorder %s81, %s84
      %p90 = scmp.eq.s32.totalorder %s10, 0
      %p91 = por %p89, %p90
      %p92 = scmp.ne.s32.totalorder %s81, %s84
      %p93 = scmp.eq.s32.totalorder %s15, 1
      %p94 = por %p92, %p93
      %p95 = scmp.ne.s32.totalorder %s84, %s85
      %p96 = scmp.eq.s32.totalorder %s15, 0
      %p97 = por %p95, %p96
      %p98 = scmp.ne.s32.totalorder %s84, %s85
      %p99 = scmp.eq.s32.totalorder %s16, 1
      %p100 = por %p98, %p99
      %p102 = scmp.ne.s32.totalorder %s85, %s101
      %p103 = scmp.eq.s32.totalorder %s16, 0
      %p104 = por %p102, %p103
      %s105 = ssub.s32 %s17, %s29
      %s106 = ssub.s32 %s18, %s25
      %s107 = sor.u32 %s105, %s106
      %p108 = scmp.eq.s32.totalorder %s107, 0
      %s110 = sadd.s32 %s109, 1
      %s111 = scalar_select %p108, %s109, %s110
      %p114 = pneg %p108
      %p115 = scmp.eq.s32.totalorder %s10, 1
      %p116 = por %p114, %p115
      %p117 = scmp.ne.s32.totalorder %s109, %s112
      %p118 = scmp.eq.s32.totalorder %s10, 0
      %p119 = por %p117, %p118
      %p120 = scmp.ne.s32.totalorder %s109, %s112
      %p121 = scmp.eq.s32.totalorder %s15, 1
      %p122 = por %p120, %p121
      %p123 = scmp.ne.s32.totalorder %s112, %s113
      %p124 = scmp.eq.s32.totalorder %s15, 0
      %p125 = por %p123, %p124
      %p126 = scmp.ne.s32.totalorder %s112, %s113
      %p127 = scmp.eq.s32.totalorder %s16, 1
      %p128 = por %p126, %p127
      %p130 = scmp.ne.s32.totalorder %s113, %s129
      %p131 = scmp.eq.s32.totalorder %s16, 0
      %p132 = por %p130, %p131
      %p133 = scmp.le.s32.totalorder 1, %s10
      %p134 = scmp.lt.s32.totalorder %s10, 3
      %p135 = pnand %p133, %p134
      %p136 = pneg %p135
      // Predicated region
      $region9: #{_apply_time_warp.1} parent=5 // pred_check
        _
      $region10: #{_apply_time_warp.1} parent=5 // pred_check_branch
        %138 = sbr.rel (%p135) target = $region12
      $region11: #{_apply_time_warp.1} parent=5 // pred_region
        %s139 = ssub.s32 %s10, 1
        // Predicated region
        $region13: #{_apply_time_warp.1} parent=11 // pred_check
          %p140 = pneg %p43
        $region14: #{_apply_time_warp.1} parent=11 // pred_check_branch
          %142 = sbr.rel (%p140) target = $region16
        $region15: #{_apply_time_warp.1} parent=11 // pred_region
          %s144 = ssub.s32 16, 16
          %145 = vsyncadd [#allocation3], %s144
          %s147 = sshll.u32 %s0, 4
          %s148 = int_to_ptr.vmem [resolvable:$true] %s147
          %150 = dma.vmem_to_smem %s148, 16, [#allocation2], [#allocation3]
        $region16: #{_apply_time_warp.1} parent=11 // pred_fallthru
          _
      $region12: #{_apply_time_warp.1} parent=5 // pred_fallthru
        _
      %p151 = scmp.lt.s32.totalorder %s10, 2
      // Predicated region
      $region17: #{_apply_time_warp.1} parent=5 // pred_check
        %p152 = pneg %p151
      $region18: #{_apply_time_warp.1} parent=5 // pred_check_branch
        %154 = sbr.rel (%p152) target = $region20
      $region19: #{_apply_time_warp.1} parent=5 // pred_region
        // Predicated region
        $region21: #{_apply_time_warp.1} parent=19 // pred_check
          %p155 = pneg %p65
        $region22: #{_apply_time_warp.1} parent=19 // pred_check_branch
          %157 = sbr.rel (%p155) target = $region24
        $region23: #{_apply_time_warp.1} parent=19 // pred_region
          %p158 = scmp.lt.s32.totalorder %s17, 1
          %s159 = scalar_select %p158, %s17, 1
          %p160 = scmp.lt.s32.totalorder %s18, 0
          %s161 = scalar_select %p160, %s18, 0
          %s162 = smul.addr %s161, 8
          %s163 = smul.addr %s159, 8
          %s164 = sadd.s32 %s162, %s163
          %s165 = smul.addr %s164, 8
          %s166 = scalar_lea.vmem %s1, %s165
        $region24: #{_apply_time_warp.1} parent=19 // pred_fallthru
          _
        // Predicated region
        $region25: #{_apply_time_warp.1} parent=19 // pred_check
          %p167 = pneg %p91
        $region26: #{_apply_time_warp.1} parent=19 // pred_check_branch
          %169 = sbr.rel (%p167) target = $region28
        $region27: #{_apply_time_warp.1} parent=19 // pred_region
          %p170 = scmp.lt.s32.totalorder %s17, 1
          %s171 = scalar_select %p170, %s17, 1
          %s172 = smul.addr %s171, 8
          %s173 = smul.addr %s172, 8
          %s174 = scalar_lea.vmem %s2, %s173
        $region28: #{_apply_time_warp.1} parent=19 // pred_fallthru
          _
      $region20: #{_apply_time_warp.1} parent=5 // pred_fallthru
        _
      %p175 = scmp.le.s32.totalorder 1, %s10
      %p176 = scmp.lt.s32.totalorder %s10, 3
      %p177 = pnand %p175, %p176
      %p178 = pneg %p177
      // Predicated region
      $region29: #{_apply_time_warp.1} parent=5 // pred_check
        _
      $region30: #{_apply_time_warp.1} parent=5 // pred_check_branch
        %180 = sbr.rel (%p177) target = $region32
      $region31: #{_apply_time_warp.1} parent=5 // pred_region
        %s181 = ssub.s32 %s10, 1
        // Predicated region
        $region33: #{_apply_time_warp.1} parent=31 // pred_check
          %p182 = pneg %p43
        $region34: #{_apply_time_warp.1} parent=31 // pred_check_branch
          %184 = sbr.rel (%p182) target = $region36
        $region35: #{_apply_time_warp.1} parent=31 // pred_region
          %185 = dma.done [#allocation3], 16
        $region36: #{_apply_time_warp.1} parent=31 // pred_fallthru
          _
        %186 = sfence
        %p187 = pneg %p43
        %p188 = pneg %p40
        %p189 = scmp.lt.s32.totalorder %s19, 1
        %s190 = scalar_select %p189, %s19, 1
        %p191 = scmp.lt.s32.totalorder %s20, 0
        %s192 = scalar_select %p191, %s20, 0
        %s193 = smul.addr %s192, 8
        %s194 = smul.addr %s190, 8
        %s195 = sadd.s32 %s193, %s194
        %s196 = smul.addr %s195, 8
        %s197 = scalar_lea.vmem %s1, %s196
        %p198 = pneg %p71
        %p199 = pneg %p68
        %p200 = scmp.lt.s32.totalorder %s19, 1
        %s201 = scalar_select %p200, %s19, 1
        %s202 = smul.addr %s201, 8
        %s203 = smul.addr %s202, 8
        %s204 = scalar_lea.vmem %s2, %s203
        %p205 = pneg %p97
        %p206 = pneg %p94
        %p207 = pneg %p125
        %p208 = pneg %p122
        %s209 = smul.u32 8, %s20
        %p210 = scmp.lt.s32.totalorder %s19, 1
        %s211 = scalar_select %p210, %s19, 1
        %p212 = scmp.lt.s32.totalorder %s209, 7
        %s213 = scalar_select %p212, %s209, 7
        %s214 = smul.addr %s211, 8
        %s215 = sadd.s32 %s213, %s214
        %s216 = smul.addr %s215, 8
        %s217 = scalar_lea.vmem %s3, %s216
        %p218 = scmp.lt.s32.totalorder %s19, 1
        %s219 = scalar_select %p218, %s19, 1
        %p220 = scmp.lt.s32.totalorder %s20, 0
        %s221 = scalar_select %p220, %s20, 0
        %s222 = smul.addr %s221, 8
        %s223 = smul.addr %s219, 8
        %s224 = sadd.s32 %s222, %s223
        %s225 = smul.addr %s224, 8
        %s226 = scalar_lea.vmem %s1, %s225
        %p227 = scmp.lt.s32.totalorder %s19, 1
        %s228 = scalar_select %p227, %s19, 1
        %s229 = smul.addr %s228, 8
        %s230 = smul.addr %s229, 8
        %s231 = scalar_lea.vmem %s2, %s230
        %s232 = smul.u32 8, %s20
        %p233 = scmp.lt.s32.totalorder %s19, 1
        %s234 = scalar_select %p233, %s19, 1
        %p235 = scmp.lt.s32.totalorder %s232, 7
        %s236 = scalar_select %p235, %s232, 7
        %s237 = smul.addr %s234, 8
        %s238 = sadd.s32 %s236, %s237
        %s239 = smul.addr %s238, 8
        %s240 = scalar_lea.vmem %s3, %s239
        %s241 = smul.u32 8, %s20
        %s242 = sadd.s32 %s19, %s20
        %s243 = sld [smem:[#allocation2 + %s242]]
        %s244 = scalar_lea.vmem %s231, %s243
        %v245 = vld [vmem:[%s244] sm:$0xff]
        %v246 = vld [vmem:[%s244 + $0x8] sm:$0xff]
        %v247 = vld [vmem:[%s244 + $0x10] sm:$0xff]
        %v248 = vld [vmem:[%s244 + $0x18] sm:$0xff]
        %v249 = vld [vmem:[%s244 + $0x20] sm:$0xff]
        %v250 = vld [vmem:[%s244 + $0x28] sm:$0xff]
        %v251 = vld [vmem:[%s244 + $0x30] sm:$0xff]
        %v252 = vld [vmem:[%s244 + $0x38] sm:$0xff]
        %v253 = vld [vmem:[%s226] sm:$0xff]
        %v254 = vld [vmem:[%s226 + $0x8] sm:$0xff]
        %v255 = vld [vmem:[%s226 + $0x10] sm:$0xff]
        %v256 = vld [vmem:[%s226 + $0x18] sm:$0xff]
        %v257 = vld [vmem:[%s226 + $0x20] sm:$0xff]
        %v258 = vld [vmem:[%s226 + $0x28] sm:$0xff]
        %v259 = vld [vmem:[%s226 + $0x30] sm:$0xff]
        %v260 = vld [vmem:[%s226 + $0x38] sm:$0xff]
        %vm261 = vcmask 523264
        %v263 = vsel %vm261, %v253, 0
        %v266 = vsel %vm261, %v254, 0
        %v269 = vsel %vm261, %v255, 0
        %v272 = vsel %vm261, %v256, 0
        %v275 = vsel %vm261, %v257, 0
        %v278 = vsel %vm261, %v258, 0
        %v281 = vsel %vm261, %v259, 0
        %v284 = vsel %vm261, %v260, 0
        %286 = vmatprep.subr.mxu0 0.0
        %287 = vmatpush1.msra.mxu0 %v245
        %288 = vmatprep.subr.mxu0 0.0
        %289 = vmatpush1.msra.mxu0 %v246
        %290 = vmatprep.subr.mxu0 0.0
        %291 = vmatpush1.msra.mxu0 %v247
        %292 = vmatprep.subr.mxu0 0.0
        %293 = vmatpush1.msra.mxu0 %v248
        %294 = vmatprep.subr.mxu0 0.0
        %295 = vmatpush1.msra.mxu0 %v249
        %296 = vmatprep.subr.mxu0 0.0
        %297 = vmatpush1.msra.mxu0 %v250
        %298 = vmatprep.subr.mxu0 0.0
        %299 = vmatpush1.msra.mxu0 %v251
        %300 = vmatprep.subr.mxu0 0.0
        %301 = vmatpush1.msra.mxu0 %v252
        %302 = vmatprep.subr.mxu0 0.0
        %303 = vmatpush1.msra.mxu0 0.0
        %304 = vmatprep.subr.mxu0 0.0
        %305 = vmatpush1.msra.mxu0 0.0
        %306 = vmatprep.subr.mxu0 0.0
        %307 = vmatpush1.msra.mxu0 0.0
        %308 = vmatprep.subr.mxu0 0.0
        %309 = vmatpush1.msra.mxu0 0.0
        %310 = vmatprep.subr.mxu0 0.0
        %311 = vmatpush1.msra.mxu0 0.0
        %312 = vmatprep.subr.mxu0 0.0
        %313 = vmatpush1.msra.mxu0 0.0
        %314 = vmatprep.subr.mxu0 0.0
        %315 = vmatpush1.msra.mxu0 0.0
        %316 = vmatprep.subr.mxu0 0.0
        %317 = vmatpush1.msra.mxu0 0.0
        %318 = vmatprep.subr.mxu0 0.0
        %319 = vmatpush1.msra.mxu0 0.0
        %320 = vmatprep.subr.mxu0 0.0
        %321 = vmatpush1.msra.mxu0 0.0
        %322 = vmatprep.subr.mxu0 0.0
        %323 = vmatpush1.msra.mxu0 0.0
        %324 = vmatprep.subr.mxu0 0.0
        %325 = vmatpush1.msra.mxu0 0.0
        %326 = vmatprep.subr.mxu0 0.0
        %327 = vmatpush1.msra.mxu0 0.0
        %328 = vmatprep.subr.mxu0 0.0
        %329 = vmatpush1.msra.mxu0 0.0
        %330 = vmatprep.subr.mxu0 0.0
        %331 = vmatpush1.msra.mxu0 0.0
        %332 = vmatprep.subr.mxu0 0.0
        %333 = vmatpush1.msra.mxu0 0.0
        %334 = vmatprep.subr.mxu0 0.0
        %335 = vmatpush1.msra.mxu0 0.0
        %336 = vmatprep.subr.mxu0 0.0
        %337 = vmatpush1.msra.mxu0 0.0
        %338 = vmatprep.subr.mxu0 0.0
        %339 = vmatpush1.msra.mxu0 0.0
        %340 = vmatprep.subr.mxu0 0.0
        %341 = vmatpush1.msra.mxu0 0.0
        %342 = vmatprep.subr.mxu0 0.0
        %343 = vmatpush1.msra.mxu0 0.0
        %344 = vmatprep.subr.mxu0 0.0
        %345 = vmatpush1.msra.mxu0 0.0
        %346 = vmatprep.subr.mxu0 0.0
        %347 = vmatpush1.msra.mxu0 0.0
        %348 = vmatprep.subr.mxu0 0.0
        %349 = vmatpush1.msra.mxu0 0.0
        %350 = vmatprep.mubr.f32.mxu0 0.0
        %351 = vmatmul.mubr.f32.gmra.mrb[0].mxu0 %v263
        %v352 = vpop.f32.mrb[0].mxu0
        %v353 = vadd.f32 0.0, %v352
        %v354 = vpop.f32.mrb[0].mxu0
        %355 = vmatprep.mubr.f32.mxu0 0.0
        %356 = vmatmul.mubr.f32.gmra.mrb[0].mxu0 %v266
        %v357 = vpop.f32.mrb[0].mxu0
        %v358 = vadd.f32 0.0, %v357
        %v359 = vpop.f32.mrb[0].mxu0
        %360 = vmatprep.mubr.f32.mxu0 0.0
        %361 = vmatmul.mubr.f32.gmra.mrb[0].mxu0 %v269
        %v362 = vpop.f32.mrb[0].mxu0
        %v363 = vadd.f32 0.0, %v362
        %v364 = vpop.f32.mrb[0].mxu0
        %365 = vmatprep.mubr.f32.mxu0 0.0
        %366 = vmatmul.mubr.f32.gmra.mrb[0].mxu0 %v272
        %v367 = vpop.f32.mrb[0].mxu0
        %v368 = vadd.f32 0.0, %v367
        %v369 = vpop.f32.mrb[0].mxu0
        %370 = vmatprep.mubr.f32.mxu0 0.0
        %371 = vmatmul.mubr.f32.gmra.mrb[0].mxu0 %v275
        %v372 = vpop.f32.mrb[0].mxu0
        %v373 = vadd.f32 0.0, %v372
        %v374 = vpop.f32.mrb[0].mxu0
        %375 = vmatprep.mubr.f32.mxu0 0.0
        %376 = vmatmul.mubr.f32.gmra.mrb[0].mxu0 %v278
        %v377 = vpop.f32.mrb[0].mxu0
        %v378 = vadd.f32 0.0, %v377
        %v379 = vpop.f32.mrb[0].mxu0
        %380 = vmatprep.mubr.f32.mxu0 0.0
        %381 = vmatmul.mubr.f32.gmra.mrb[0].mxu0 %v281
        %v382 = vpop.f32.mrb[0].mxu0
        %v383 = vadd.f32 0.0, %v382
        %v384 = vpop.f32.mrb[0].mxu0
        %385 = vmatprep.mubr.f32.mxu0 0.0
        %386 = vmatmul.mubr.f32.gmra.mrb[0].mxu0 %v284
        %v387 = vpop.f32.mrb[0].mxu0
        %v388 = vadd.f32 0.0, %v387
        %v389 = vpop.f32.mrb[0].mxu0
        %390 = vdwg.mxu0
        %vm391 = vcmask 130048
        %392 = vst.msk [vmem:[%s240] sm:$0xff] %vm391, %v353
        %393 = vst.msk [vmem:[%s240 + $0x8] sm:$0xff] %vm391, %v358
        %394 = vst.msk [vmem:[%s240 + $0x10] sm:$0xff] %vm391, %v363
        %395 = vst.msk [vmem:[%s240 + $0x18] sm:$0xff] %vm391, %v368
        %396 = vst.msk [vmem:[%s240 + $0x20] sm:$0xff] %vm391, %v373
        %397 = vst.msk [vmem:[%s240 + $0x28] sm:$0xff] %vm391, %v378
        %398 = vst.msk [vmem:[%s240 + $0x30] sm:$0xff] %vm391, %v383
        %399 = vst.msk [vmem:[%s240 + $0x38] sm:$0xff] %vm391, %v388
        %s400 = smul.u32 8, %s20
        %p401 = scmp.lt.s32.totalorder %s19, 1
        %s402 = scalar_select %p401, %s19, 1
        %p403 = scmp.lt.s32.totalorder %s400, 7
        %s404 = scalar_select %p403, %s400, 7
        %s405 = smul.addr %s402, 8
        %s406 = sadd.s32 %s404, %s405
        %s407 = smul.addr %s406, 8
        %s408 = scalar_lea.vmem %s3, %s407
        // Predicated region
        $region37: #{_apply_time_warp.1} parent=31 // pred_check
          %p409 = pneg %p122
        $region38: #{_apply_time_warp.1} parent=31 // pred_check_branch
          %411 = sbr.rel (%p409) target = $region40
        $region39: #{_apply_time_warp.1} parent=31 // pred_region
          %s412 = smul.u32 8, %s20
        $region40: #{_apply_time_warp.1} parent=31 // pred_fallthru
          _
      $region32: #{_apply_time_warp.1} parent=5 // pred_fallthru
        _
      %p413 = scmp.le.s32.totalorder 2, %s10
      // Predicated region
      $region41: #{_apply_time_warp.1} parent=5 // pred_check
        %p414 = pneg %p413
      $region42: #{_apply_time_warp.1} parent=5 // pred_check_branch
        %416 = sbr.rel (%p414) target = $region44
      $region43: #{_apply_time_warp.1} parent=5 // pred_region
        %s417 = ssub.s32 %s10, 2
        // Predicated region
        $region45: #{_apply_time_warp.1} parent=43 // pred_check
          %p418 = pneg %p128
        $region46: #{_apply_time_warp.1} parent=43 // pred_check_branch
          %420 = sbr.rel (%p418) target = $region48
        $region47: #{_apply_time_warp.1} parent=43 // pred_region
          %s421 = smul.u32 8, %s22
          %p422 = scmp.lt.s32.totalorder %s21, 1
          %s423 = scalar_select %p422, %s21, 1
          %p424 = scmp.lt.s32.totalorder %s421, 7
          %s425 = scalar_select %p424, %s421, 7
          %s426 = smul.addr %s423, 8
          %s427 = sadd.s32 %s425, %s426
          %s428 = smul.addr %s427, 8
          %s429 = scalar_lea.vmem %s3, %s428
        $region48: #{_apply_time_warp.1} parent=43 // pred_fallthru
          _
      $region44: #{_apply_time_warp.1} parent=5 // pred_fallthru
        _
    $region6: #{_apply_time_warp.1} parent=1 // loop_footer
      %s14 = sadd.s32 1, %s10
    $region7: #{_apply_time_warp.1} parent=1 // loop_footer_branch
      %9 = sbr.rel target = $region3
    $region8: #{_apply_time_warp.1} parent=1 // loop_exit
      _
    %430 = vsyncpa [#allocation3], 1
    %s431 = scalar_lea.sflag [#allocation3], 1
    %432 = vsyncpa %s431, 1

</llo_original>
